<compile_context>
chip_gen: v7x
topology: tpu7x:2x2x1
jax: 0.10.0
libtpu: 0.0.40
codegen_flags: <defaults>
</compile_context>

<pallas_src>
import jax
import jax.numpy as jnp
from jax.experimental import pallas as pl
from jax.experimental.pallas import tpu as pltpu


def _mlp_kernel(x_ref, w1_ref, b1_ref, w2_ref, b2_ref, o_ref):
    # x: (C_in, TILE_S)   w1: (C_hid, C_in)   w2: (C_out, C_hid)
    # b1: (C_hid, 1) f32  b2: (C_out, 1) f32  o: (C_out, TILE_S)
    #
    # NOTE: when S is not a multiple of 128 the tail tile carries padded /
    # undefined columns on the lane axis. That is safe because every op here
    # is per-column and the output store is masked to the valid extent — do
    # NOT add a reduction over the spatial (lane) axis without masking first.
    x = x_ref[...]
    h = jnp.dot(w1_ref[...], x, preferred_element_type=jnp.float32)
    h = jnp.maximum(h + b1_ref[...], 0.0)                    # bias + ReLU in f32
    y = jnp.dot(w2_ref[...], h.astype(w2_ref.dtype),
                preferred_element_type=jnp.float32)
    o_ref[...] = (y + b2_ref[...]).astype(o_ref.dtype)


def _round_down_128(v):
    return (v // 128) * 128


def _is_v5e():
    try:
        kind = jax.devices()[0].device_kind.lower()
    except Exception:
        return False
    return ("v5e" in kind) or ("v5 lite" in kind) or ("v5litepod" in kind)


def mlp_pallas(x_ncdhw, w1, b1, w2, b2, *, tile_s=65536,
               compute_dtype="auto", out_dtype=None,
               vmem_budget_bytes=16 * 1024 * 1024, min_grid_steps=8):
    """Fused per-voxel MLP. x_ncdhw: (N, C_in, D, H, W) — PyTorch layout.

    w1: (C_hid, C_in), b1: (C_hid,), w2: (C_out, C_hid), b2: (C_out,)
    compute_dtype: "auto" (bf16 on v5e, else no cast), None, or a dtype for
      the x/weight cast (halves HBM read traffic). Accumulation, bias+ReLU
      epilogue and the OUTPUT stay f32 (out_dtype defaults to x's dtype).
    """
    n, c_in, d, h, w = x_ncdhw.shape
    c_hid = w1.shape[0]
    c_out = w2.shape[0]
    s = d * h * w

    orig_dtype = x_ncdhw.dtype
    if out_dtype is None:
        out_dtype = orig_dtype

    if isinstance(compute_dtype, str) and compute_dtype == "auto":
        compute_dtype = jnp.bfloat16 if _is_v5e() else None
    if compute_dtype is not None:
        x_ncdhw = x_ncdhw.astype(compute_dtype)
        w1 = w1.astype(compute_dtype)
        w2 = w2.astype(compute_dtype)

    # Free (view) reshape: no transpose, no extra HBM pass.
    x3 = x_ncdhw.reshape(n, c_in, s)
    b1_2d = b1.reshape(c_hid, 1).astype(jnp.float32)
    b2_2d = b2.reshape(c_out, 1).astype(jnp.float32)

    s_pad = ((s + 127) // 128) * 128

    # --- tile sizing (the real lever: this kernel is HBM-bandwidth-bound) ---
    # Conservative 4 B/elem VMEM accounting: exact for f32 and also covers the
    # bf16 sublane-underpacking case (C=8 fills half of a (16,128) packed tile).
    bytes_per_col = 2 * (c_in + c_out) * 4            # double-buffered x + out
    tile_cap_vmem = max(128, _round_down_128(vmem_budget_bytes // bytes_per_col))

    # Keep >= ~min_grid_steps total steps so v7x's 2 TensorCores both stream
    # (only bites for large S / small N; floored at 512 columns).
    steps_per_batch = -(-min_grid_steps // n)          # ceil div
    tile_cap_steps = max(512, _round_down_128(s_pad // steps_per_batch))

    tile_req = max(128, _round_down_128(tile_s))
    tile = max(128, min(tile_req, s_pad, tile_cap_vmem, tile_cap_steps))
    grid_s = pl.cdiv(s, tile)                          # partial tail tile OK

    # Explicit scoped-VMEM limit: double-buffered tiles + weights + headroom,
    # clamped to [16 MiB, 32 MiB] — safe on v5e/v6e (128 MiB physical) and
    # within v7x's 32 MiB scoped default / 64 MiB physical.
    w_bytes = 2 * 4 * (c_hid * c_in + c_out * c_hid + c_hid + c_out)
    vmem_limit = bytes_per_col * tile + w_bytes + (4 << 20)
    vmem_limit = int(min(max(vmem_limit, 16 << 20), 32 << 20))

    out3 = pl.pallas_call(
        _mlp_kernel,
        out_shape=jax.ShapeDtypeStruct((n, c_out, s), out_dtype),
        grid_spec=pltpu.PrefetchScalarGridSpec(
            num_scalar_prefetch=0,
            grid=(n, grid_s),
            in_specs=[
                # x block: squeeze batch dim, full channels, spatial tile
                pl.BlockSpec((None, c_in, tile), lambda b, i: (b, 0, i)),
                # weights / biases: resident (constant block index)
                pl.BlockSpec((c_hid, c_in), lambda b, i: (0, 0)),
                pl.BlockSpec((c_hid, 1), lambda b, i: (0, 0)),
                pl.BlockSpec((c_out, c_hid), lambda b, i: (0, 0)),
                pl.BlockSpec((c_out, 1), lambda b, i: (0, 0)),
            ],
            out_specs=pl.BlockSpec((None, c_out, tile), lambda b, i: (b, 0, i)),
        ),
        compiler_params=pltpu.CompilerParams(
            dimension_semantics=("parallel", "parallel"),
            vmem_limit_bytes=vmem_limit),
    )(x3, w1, b1_2d, w2, b2_2d)

    # Free reshape back to (N, C_out, D, H, W).
    return out3.reshape(n, c_out, d, h, w)


def init_params(key, c_in, c_out):
    """Deterministic Conv3d-style init (uniform +/- 1/sqrt(fan_in)).

    Weights stored (out_channels, in_channels), same orientation as the
    squeezed PyTorch Conv3d kernel.
    """
    c_hid = c_in // 2
    k1, k2, k3, k4 = jax.random.split(key, 4)
    bnd1 = 1.0 / (c_in ** 0.5)
    bnd2 = 1.0 / (c_hid ** 0.5)
    w1 = jax.random.uniform(k1, (c_hid, c_in), jnp.float32, -bnd1, bnd1)
    b1 = jax.random.uniform(k2, (c_hid,), jnp.float32, -bnd1, bnd1)
    w2 = jax.random.uniform(k3, (c_out, c_hid), jnp.float32, -bnd2, bnd2)
    b2 = jax.random.uniform(k4, (c_out,), jnp.float32, -bnd2, bnd2)
    return w1, b1, w2, b2


def mlp_reference(x_ncdhw, w1, b1, w2, b2):
    """Pure-JAX reference of the PyTorch forward (1x1x1 convs as matmuls)."""
    x = jnp.transpose(x_ncdhw, (0, 2, 3, 4, 1))            # N,D,H,W,C
    h = jnp.maximum(jnp.einsum('ndhwc,kc->ndhwk', x, w1) + b1, 0.0)
    y = jnp.einsum('ndhwc,kc->ndhwk', h, w2) + b2
    return jnp.transpose(y, (0, 4, 1, 2, 3))


if __name__ == "__main__":
    key = jax.random.PRNGKey(0)
    kx, kp = jax.random.split(key)

    # small shapes: N=2, C_in=8 (hidden=4), D=4, H=8, W=8 -> S=256 per sample
    N, C_IN, D, H, W = 2, 8, 4, 8, 8
    C_OUT = C_IN  # out_channels defaults to input_channels in the module

    x = jax.random.normal(kx, (N, C_IN, D, H, W), jnp.float32)
    w1, b1, w2, b2 = init_params(kp, C_IN, C_OUT)
    ref = mlp_reference(x, w1, b1, w2, b2)

    # explicit f32 compute path — tight tolerance
    out_f32 = jax.block_until_ready(
        mlp_pallas(x, w1, b1, w2, b2, compute_dtype=None))
    assert out_f32.shape == (N, C_OUT, D, H, W)
    assert out_f32.dtype == x.dtype
    assert jnp.allclose(out_f32, ref, atol=1e-5, rtol=1e-5)

    # explicit bf16 compute path (default on v5e) — f32 output, looser tol
    out_bf16 = jax.block_until_ready(
        mlp_pallas(x, w1, b1, w2, b2, compute_dtype=jnp.bfloat16))
    assert out_bf16.dtype == x.dtype
    assert jnp.allclose(out_bf16, ref, atol=5e-2, rtol=5e-2)

    # default "auto" path (bf16 on v5e, f32 elsewhere) — tol valid for both
    out_auto = jax.block_until_ready(mlp_pallas(x, w1, b1, w2, b2))
    assert out_auto.shape == (N, C_OUT, D, H, W)
    assert jnp.allclose(out_auto, ref, atol=5e-2, rtol=5e-2)

    print("KERNEL_OK")
</pallas_src>

<mosaic_0001>
module attributes {stable_mosaic.version = 11 : i64} {
  func.func @_mlp_kernel(%arg0: i32, %arg1: i32, %arg2: memref<1x8x256xf32, #tpu.memory_space<vmem>>, %arg3: memref<4x8xf32, #tpu.memory_space<vmem>>, %arg4: memref<4x1xf32, #tpu.memory_space<vmem>>, %arg5: memref<8x4xf32, #tpu.memory_space<vmem>>, %arg6: memref<8x1xf32, #tpu.memory_space<vmem>>, %arg7: memref<1x8x256xf32, #tpu.memory_space<vmem>>) attributes {dimension_semantics = [#tpu.dimension_semantics<parallel>, #tpu.dimension_semantics<parallel>], iteration_bounds = array<i64: 2, 1>, scalar_prefetch = 0 : i64, scratch_operands = 0 : i64, tpu.core_type = #tpu.core_type<tc>, window_params = [{transform_indices = @transform_0, window_bounds = array<i64: 1, 8, 256>}, {pipeline_mode = #tpu.pipeline_mode<synchronous>, transform_indices = @transform_1, window_bounds = array<i64: 4, 8>}, {pipeline_mode = #tpu.pipeline_mode<synchronous>, transform_indices = @transform_2, window_bounds = array<i64: 4, 1>}, {pipeline_mode = #tpu.pipeline_mode<synchronous>, transform_indices = @transform_3, window_bounds = array<i64: 8, 4>}, {pipeline_mode = #tpu.pipeline_mode<synchronous>, transform_indices = @transform_4, window_bounds = array<i64: 8, 1>}, {transform_indices = @transform_5, window_bounds = array<i64: 1, 8, 256>}]} {
    %c0 = arith.constant 0 : index
    %c0_0 = arith.constant 0 : index
    %c0_1 = arith.constant 0 : index
    %0 = vector.load %arg2[%c0, %c0_0, %c0_1] : memref<1x8x256xf32, #tpu.memory_space<vmem>>, vector<1x8x256xf32>
    %1 = vector.shape_cast %0 : vector<1x8x256xf32> to vector<8x256xf32>
    %c0_2 = arith.constant 0 : index
    %c0_3 = arith.constant 0 : index
    %2 = vector.load %arg3[%c0_2, %c0_3] : memref<4x8xf32, #tpu.memory_space<vmem>>, vector<4x8xf32>
    %cst = arith.constant dense<0.000000e+00> : vector<4x256xf32>
    %3 = tpu.matmul %2, %1, %cst {dimension_numbers = #tpu.dot_dimension_numbers<[1], [0], [0], [1], [0, 0, 1, 1], [], []>} : vector<4x8xf32>, vector<8x256xf32>, vector<4x256xf32> -> vector<4x256xf32>
    %c0_4 = arith.constant 0 : index
    %c0_5 = arith.constant 0 : index
    %4 = vector.load %arg4[%c0_4, %c0_5] : memref<4x1xf32, #tpu.memory_space<vmem>>, vector<4x1xf32>
    %5 = vector.broadcast %4 : vector<4x1xf32> to vector<4x256xf32>
    %6 = arith.addf %3, %5 : vector<4x256xf32>
    %cst_6 = arith.constant 0.000000e+00 : f32
    %7 = vector.broadcast %cst_6 : f32 to vector<4x256xf32>
    %8 = arith.maximumf %6, %7 : vector<4x256xf32>
    %c0_7 = arith.constant 0 : index
    %c0_8 = arith.constant 0 : index
    %9 = vector.load %arg5[%c0_7, %c0_8] : memref<8x4xf32, #tpu.memory_space<vmem>>, vector<8x4xf32>
    %cst_9 = arith.constant dense<0.000000e+00> : vector<8x256xf32>
    %10 = tpu.matmul %9, %8, %cst_9 {dimension_numbers = #tpu.dot_dimension_numbers<[1], [0], [0], [1], [0, 0, 1, 1], [], []>} : vector<8x4xf32>, vector<4x256xf32>, vector<8x256xf32> -> vector<8x256xf32>
    %c0_10 = arith.constant 0 : index
    %c0_11 = arith.constant 0 : index
    %11 = vector.load %arg6[%c0_10, %c0_11] : memref<8x1xf32, #tpu.memory_space<vmem>>, vector<8x1xf32>
    %12 = vector.broadcast %11 : vector<8x1xf32> to vector<8x256xf32>
    %13 = arith.addf %10, %12 : vector<8x256xf32>
    %c0_12 = arith.constant 0 : index
    %c0_13 = arith.constant 0 : index
    %c0_14 = arith.constant 0 : index
    %14 = vector.load %arg7[%c0_12, %c0_13, %c0_14] : memref<1x8x256xf32, #tpu.memory_space<vmem>>, vector<1x8x256xf32>
    %15 = vector.shape_cast %14 : vector<1x8x256xf32> to vector<8x256xf32>
    %16 = vector.shape_cast %13 : vector<8x256xf32> to vector<1x8x256xf32>
    tpu.vector_store %arg7[%c0_12, %c0_13, %c0_14], %16 {strides = array<i32>} : memref<1x8x256xf32, #tpu.memory_space<vmem>>, vector<1x8x256xf32>,
    return
  }
  func.func @transform_0(%arg0: i32, %arg1: i32) -> (i32, i32, i32) {
    %c0_i32 = arith.constant 0 : i32
    %c0_i32_0 = arith.constant 0 : i32
    return %arg0, %c0_i32, %arg1 : i32, i32, i32
  }
  func.func @transform_1(%arg0: i32, %arg1: i32) -> (i32, i32) {
    %c0_i32 = arith.constant 0 : i32
    %c0_i32_0 = arith.constant 0 : i32
    %c0_i32_1 = arith.constant 0 : i32
    return %c0_i32, %c0_i32_0 : i32, i32
  }
  func.func @transform_2(%arg0: i32, %arg1: i32) -> (i32, i32) {
    %c0_i32 = arith.constant 0 : i32
    %c0_i32_0 = arith.constant 0 : i32
    %c0_i32_1 = arith.constant 0 : i32
    return %c0_i32, %c0_i32_0 : i32, i32
  }
  func.func @transform_3(%arg0: i32, %arg1: i32) -> (i32, i32) {
    %c0_i32 = arith.constant 0 : i32
    %c0_i32_0 = arith.constant 0 : i32
    %c0_i32_1 = arith.constant 0 : i32
    return %c0_i32, %c0_i32_0 : i32, i32
  }
  func.func @transform_4(%arg0: i32, %arg1: i32) -> (i32, i32) {
    %c0_i32 = arith.constant 0 : i32
    %c0_i32_0 = arith.constant 0 : i32
    %c0_i32_1 = arith.constant 0 : i32
    return %c0_i32, %c0_i32_0 : i32, i32
  }
  func.func @transform_5(%arg0: i32, %arg1: i32) -> (i32, i32, i32) {
    %c0_i32 = arith.constant 0 : i32
    %c0_i32_0 = arith.constant 0 : i32
    return %arg0, %c0_i32, %arg1 : i32, i32, i32
  }
}

</mosaic_0001>

<llo_original>
// kernel: tpu_custom_call.1
$region0: #{tpu_custom_call.1}
  #allocation0 [shape = 'u32[]', space=smem, size = 0x4, offset = 0x4, fixed_abs, tag = 'smem constant byte address 0x4 - core index']
  #allocation1 [shape = 'u32[144,128]{1,0:T(1,128)}', space=vmem, size = 0x12000, scoped, tag = 'internal scratch']
  %s0 = inlined_call_operand.hbm [shape: f32[2,8,256], index: 0, kind: input, shape index: {}]
  %s1 = inlined_call_operand.vmem [shape: f32[4,8], index: 1, kind: input, shape index: {}]
  %s2 = inlined_call_operand.vmem [shape: f32[4,1], index: 2, kind: input, shape index: {}]
  %s3 = inlined_call_operand.vmem [shape: f32[8,4], index: 3, kind: input, shape index: {}]
  %s4 = inlined_call_operand.vmem [shape: f32[8,1], index: 4, kind: input, shape index: {}]
  %s5 = inlined_call_operand.hbm [shape: f32[2,8,256], index: 5, kind: output, shape index: {}]
  %s6 = sld [smem:[#allocation0]]
  $region57: #{tpu_custom_call.1} parent=0
    _
  %s8 = ssub.s32 1, %s6
  %s9 = scalar_select 0, %s8, %s6
  $region1: #{tpu_custom_call.1} parent=0
    #allocation2 [shape = 'u8[16384]{0}', space=vmem, size = 0x4000, scoped, tag = 'input window, operand 0']
    #allocation3 [shape = 's32[2]{0}', space=sflag, size = 0x8, scoped, tag = 'scoped memory for tpu_custom_call.1']
    #allocation4 [shape = 's32[2]{0}', space=sflag, size = 0x8, scoped, tag = 'scoped memory for tpu_custom_call.1']
    #allocation5 [shape = 'u8[16384]{0}', space=vmem, size = 0x4000, scoped, tag = 'output window, operand 0']
    %10 = vsyncpa [#allocation3], 0
    %s11 = scalar_lea.sflag [#allocation3], 1
    %12 = vsyncpa %s11, 0
    %13 = vsyncpa [#allocation4], 0
    %s14 = scalar_lea.sflag [#allocation4], 1
    %15 = vsyncpa %s14, 0
    loop: start=0, step=1, limit=4
    $region2: #{tpu_custom_call.1} parent=1 // loop_pre_header
      _
    $region3: #{tpu_custom_call.1} parent=1 // loop_header
      %s17 = sphi 0, %s21
      %p18 = scmp.ge.s32.totalorder %s17, 4
      %s24 = sphi 0, %s36
      %s25 = sphi 0, %s32
      %s26 = sphi 0, %s24
      %s27 = sphi 0, %s25
      %s28 = sphi 0, %s26
      %s29 = sphi 0, %s27
      %s41 = sphi 0, %s43
      %s44 = sphi 0, %s41
      %s45 = sphi 0, %s44
      %s61 = sphi 0, %s45
      %s65 = sphi 0, %s65
      %s67 = sphi 0, %s65
      %s68 = sphi 0, %s67
      %s82 = sphi 0, %s68
      %s86 = sphi 0, %s86
      %s88 = sphi 0, %s86
      %s89 = sphi 0, %s88
      %s103 = sphi 0, %s89
      %s107 = sphi 0, %s107
      %s109 = sphi 0, %s107
      %s110 = sphi 0, %s109
      %s124 = sphi 0, %s110
      %s128 = sphi 0, %s128
      %s130 = sphi 0, %s128
      %s131 = sphi 0, %s130
      %s145 = sphi 0, %s131
      %s153 = sphi 0, %s155
      %s156 = sphi 0, %s153
      %s157 = sphi 0, %s156
      %s173 = sphi 0, %s157
    $region4: #{tpu_custom_call.1} parent=1 // loop_header_branch
      %20 = sbr.rel (%p18) target = $region8
    $region5: #{tpu_custom_call.1} parent=1 // loop_body
      %s22 = ssub.s32 %s17, 1
      %s23 = ssub.s32 %s17, 2
      %s30 = sadd.s32 1, %s25
      %p31 = scmp.ge.s32.totalorder %s30, 1
      %s32 = scalar_select %p31, 0, %s30
      %s33 = sadd.s32 1, %s24
      %s34 = scalar_select %p31, %s33, %s24
      %p35 = scmp.ge.s32.totalorder %s34, 2
      %s36 = scalar_select %p35, 0, %s34
      %s37 = ssub.s32 %s24, %s36
      %s38 = ssub.s32 %s25, %s32
      %s39 = sor.u32 %s37, %s38
      %p40 = scmp.eq.s32.totalorder %s39, 0
      %s42 = sadd.s32 %s41, 1
      %s43 = scalar_select %p40, %s41, %s42
      %p46 = pneg %p40
      %p47 = scmp.eq.s32.totalorder %s17, 1
      %p48 = por %p46, %p47
      %p49 = scmp.ne.s32.totalorder %s41, %s44
      %p50 = scmp.eq.s32.totalorder %s17, 0
      %p51 = por %p49, %p50
      %p52 = scmp.ne.s32.totalorder %s41, %s44
      %p53 = scmp.eq.s32.totalorder %s22, 1
      %p54 = por %p52, %p53
      %p55 = scmp.ne.s32.totalorder %s44, %s45
      %p56 = scmp.eq.s32.totalorder %s22, 0
      %p57 = por %p55, %p56
      %p58 = scmp.ne.s32.totalorder %s44, %s45
      %p59 = scmp.eq.s32.totalorder %s23, 1
      %p60 = por %p58, %p59
      %p62 = scmp.ne.s32.totalorder %s45, %s61
      %p63 = scmp.eq.s32.totalorder %s23, 0
      %p64 = por %p62, %p63
      %s66 = sadd.s32 %s65, 1
      %p69 = scmp.eq.s32.totalorder %s17, 1
      %p70 = scmp.ne.s32.totalorder %s65, %s67
      %p71 = scmp.eq.s32.totalorder %s17, 0
      %p72 = por %p70, %p71
      %p73 = scmp.ne.s32.totalorder %s65, %s67
      %p74 = scmp.eq.s32.totalorder %s22, 1
      %p75 = por %p73, %p74
      %p76 = scmp.ne.s32.totalorder %s67, %s68
      %p77 = scmp.eq.s32.totalorder %s22, 0
      %p78 = por %p76, %p77
      %p79 = scmp.ne.s32.totalorder %s67, %s68
      %p80 = scmp.eq.s32.totalorder %s23, 1
      %p81 = por %p79, %p80
      %p83 = scmp.ne.s32.totalorder %s68, %s82
      %p84 = scmp.eq.s32.totalorder %s23, 0
      %p85 = por %p83, %p84
      %s87 = sadd.s32 %s86, 1
      %p90 = scmp.eq.s32.totalorder %s17, 1
      %p91 = scmp.ne.s32.totalorder %s86, %s88
      %p92 = scmp.eq.s32.totalorder %s17, 0
      %p93 = por %p91, %p92
      %p94 = scmp.ne.s32.totalorder %s86, %s88
      %p95 = scmp.eq.s32.totalorder %s22, 1
      %p96 = por %p94, %p95
      %p97 = scmp.ne.s32.totalorder %s88, %s89
      %p98 = scmp.eq.s32.totalorder %s22, 0
      %p99 = por %p97, %p98
      %p100 = scmp.ne.s32.totalorder %s88, %s89
      %p101 = scmp.eq.s32.totalorder %s23, 1
      %p102 = por %p100, %p101
      %p104 = scmp.ne.s32.totalorder %s89, %s103
      %p105 = scmp.eq.s32.totalorder %s23, 0
      %p106 = por %p104, %p105
      %s108 = sadd.s32 %s107, 1
      %p111 = scmp.eq.s32.totalorder %s17, 1
      %p112 = scmp.ne.s32.totalorder %s107, %s109
      %p113 = scmp.eq.s32.totalorder %s17, 0
      %p114 = por %p112, %p113
      %p115 = scmp.ne.s32.totalorder %s107, %s109
      %p116 = scmp.eq.s32.totalorder %s22, 1
      %p117 = por %p115, %p116
      %p118 = scmp.ne.s32.totalorder %s109, %s110
      %p119 = scmp.eq.s32.totalorder %s22, 0
      %p120 = por %p118, %p119
      %p121 = scmp.ne.s32.totalorder %s109, %s110
      %p122 = scmp.eq.s32.totalorder %s23, 1
      %p123 = por %p121, %p122
      %p125 = scmp.ne.s32.totalorder %s110, %s124
      %p126 = scmp.eq.s32.totalorder %s23, 0
      %p127 = por %p125, %p126
      %s129 = sadd.s32 %s128, 1
      %p132 = scmp.eq.s32.totalorder %s17, 1
      %p133 = scmp.ne.s32.totalorder %s128, %s130
      %p134 = scmp.eq.s32.totalorder %s17, 0
      %p135 = por %p133, %p134
      %p136 = scmp.ne.s32.totalorder %s128, %s130
      %p137 = scmp.eq.s32.totalorder %s22, 1
      %p138 = por %p136, %p137
      %p139 = scmp.ne.s32.totalorder %s130, %s131
      %p140 = scmp.eq.s32.totalorder %s22, 0
      %p141 = por %p139, %p140
      %p142 = scmp.ne.s32.totalorder %s130, %s131
      %p143 = scmp.eq.s32.totalorder %s23, 1
      %p144 = por %p142, %p143
      %p146 = scmp.ne.s32.totalorder %s131, %s145
      %p147 = scmp.eq.s32.totalorder %s23, 0
      %p148 = por %p146, %p147
      %s149 = ssub.s32 %s24, %s36
      %s150 = ssub.s32 %s25, %s32
      %s151 = sor.u32 %s149, %s150
      %p152 = scmp.eq.s32.totalorder %s151, 0
      %s154 = sadd.s32 %s153, 1
      %s155 = scalar_select %p152, %s153, %s154
      %p158 = pneg %p152
      %p159 = scmp.eq.s32.totalorder %s17, 1
      %p160 = por %p158, %p159
      %p161 = scmp.ne.s32.totalorder %s153, %s156
      %p162 = scmp.eq.s32.totalorder %s17, 0
      %p163 = por %p161, %p162
      %p164 = scmp.ne.s32.totalorder %s153, %s156
      %p165 = scmp.eq.s32.totalorder %s22, 1
      %p166 = por %p164, %p165
      %p167 = scmp.ne.s32.totalorder %s156, %s157
      %p168 = scmp.eq.s32.totalorder %s22, 0
      %p169 = por %p167, %p168
      %p170 = scmp.ne.s32.totalorder %s156, %s157
      %p171 = scmp.eq.s32.totalorder %s23, 1
      %p172 = por %p170, %p171
      %p174 = scmp.ne.s32.totalorder %s157, %s173
      %p175 = scmp.eq.s32.totalorder %s23, 0
      %p176 = por %p174, %p175
      %p177 = scmp.le.s32.totalorder 1, %s17
      %p178 = scmp.lt.s32.totalorder %s17, 3
      %p179 = pnand %p177, %p178
      %p180 = pneg %p179
      // Predicated region
      $region9: #{tpu_custom_call.1} parent=5 // pred_check
        _
      $region10: #{tpu_custom_call.1} parent=5 // pred_check_branch
        %182 = sbr.rel (%p179) target = $region12
      $region11: #{tpu_custom_call.1} parent=5 // pred_region
        %s183 = ssub.s32 %s17, 1
        // Predicated region
        $region13: #{tpu_custom_call.1} parent=11 // pred_check
          %p184 = pneg %p78
        $region14: #{tpu_custom_call.1} parent=11 // pred_check_branch
          %186 = sbr.rel (%p184) target = $region16
        $region15: #{tpu_custom_call.1} parent=11 // pred_region
          _
        $region16: #{tpu_custom_call.1} parent=11 // pred_fallthru
          _
        // Predicated region
        $region17: #{tpu_custom_call.1} parent=11 // pred_check
          %p187 = pneg %p99
        $region18: #{tpu_custom_call.1} parent=11 // pred_check_branch
          %189 = sbr.rel (%p187) target = $region20
        $region19: #{tpu_custom_call.1} parent=11 // pred_region
          _
        $region20: #{tpu_custom_call.1} parent=11 // pred_fallthru
          _
        // Predicated region
        $region21: #{tpu_custom_call.1} parent=11 // pred_check
          %p190 = pneg %p120
        $region22: #{tpu_custom_call.1} parent=11 // pred_check_branch
          %192 = sbr.rel (%p190) target = $region24
        $region23: #{tpu_custom_call.1} parent=11 // pred_region
          _
        $region24: #{tpu_custom_call.1} parent=11 // pred_fallthru
          _
        // Predicated region
        $region25: #{tpu_custom_call.1} parent=11 // pred_check
          %p193 = pneg %p141
        $region26: #{tpu_custom_call.1} parent=11 // pred_check_branch
          %195 = sbr.rel (%p193) target = $region28
        $region27: #{tpu_custom_call.1} parent=11 // pred_region
          _
        $region28: #{tpu_custom_call.1} parent=11 // pred_fallthru
          _
      $region12: #{tpu_custom_call.1} parent=5 // pred_fallthru
        _
      %p196 = scmp.lt.s32.totalorder %s17, 2
      // Predicated region
      $region29: #{tpu_custom_call.1} parent=5 // pred_check
        %p197 = pneg %p196
      $region30: #{tpu_custom_call.1} parent=5 // pred_check_branch
        %199 = sbr.rel (%p197) target = $region32
      $region31: #{tpu_custom_call.1} parent=5 // pred_region
        // Predicated region
        $region33: #{tpu_custom_call.1} parent=31 // pred_check
          %p200 = pneg %p51
        $region34: #{tpu_custom_call.1} parent=31 // pred_check_branch
          %202 = sbr.rel (%p200) target = $region36
        $region35: #{tpu_custom_call.1} parent=31 // pred_region
          %s203 = sand.u32 %s41, 1
          %s204 = scalar_lea.sflag [#allocation3], %s203
          %s205 = sand.u32 %s41, 1
          %s206 = smul.addr %s205, 16
          %s207 = scalar_lea.vmem [#allocation2], %s206
          %s208 = smul.u32 2, %s25
          %s210 = ssub.s32 256, 256
          %211 = vsyncadd %s204, %s210
          %s212 = smul.addr %s24, 2
          %s213 = sadd.s32 %s208, %s212
          %s214 = smul.addr %s213, 128
          %s215 = scalar_lea.hbm %s0, %s214
          %s217 = sshll.u32 %s207, 4
          %s218 = int_to_ptr.vmem [resolvable:$true] %s217
          %220 = dma.hbm_to_vmem [thread:$0]  %s215, 256, %s218, %s204
        $region36: #{tpu_custom_call.1} parent=31 // pred_fallthru
          _
      $region32: #{tpu_custom_call.1} parent=5 // pred_fallthru
        _
      %p221 = scmp.le.s32.totalorder 1, %s17
      %p222 = scmp.lt.s32.totalorder %s17, 3
      %p223 = pnand %p221, %p222
      %p224 = pneg %p223
      // Predicated region
      $region37: #{tpu_custom_call.1} parent=5 // pred_check
        _
      $region38: #{tpu_custom_call.1} parent=5 // pred_check_branch
        %226 = sbr.rel (%p223) target = $region40
      $region39: #{tpu_custom_call.1} parent=5 // pred_region
        %s227 = ssub.s32 %s17, 1
        %s228 = sand.u32 %s44, 1
        %s229 = scalar_lea.sflag [#allocation3], %s228
        %s230 = sand.u32 %s44, 1
        %s231 = smul.addr %s230, 16
        %s232 = scalar_lea.vmem [#allocation2], %s231
        // Predicated region
        $region41: #{tpu_custom_call.1} parent=39 // pred_check
          %p233 = pneg %p57
        $region42: #{tpu_custom_call.1} parent=39 // pred_check_branch
          %235 = sbr.rel (%p233) target = $region44
        $region43: #{tpu_custom_call.1} parent=39 // pred_region
          %236 = dma.done %s229, 256
        $region44: #{tpu_custom_call.1} parent=39 // pred_fallthru
          _
        %s237 = sand.u32 %s44, 1
        %s238 = scalar_lea.sflag [#allocation3], %s237
        %s239 = sand.u32 %s44, 1
        %s240 = smul.addr %s239, 16
        %s241 = scalar_lea.vmem [#allocation2], %s240
        %p242 = pneg %p57
        %p243 = pneg %p54
        %p244 = pneg %p78
        %p245 = pneg %p75
        %p246 = pneg %p99
        %p247 = pneg %p96
        %p248 = pneg %p120
        %p249 = pneg %p117
        %p250 = pneg %p141
        %p251 = pneg %p138
        %p252 = pneg %p169
        %p253 = pneg %p166
        %s254 = sand.u32 %s156, 1
        %s255 = scalar_lea.sflag [#allocation4], %s254
        %s256 = sand.u32 %s156, 1
        %s257 = smul.addr %s256, 16
        %s258 = scalar_lea.vmem [#allocation5], %s257
        %s259 = smul.u32 2, %s27
        %s260 = smul.u32 2, %s27
        %v261 = vld [vmem:[%s232] sm:$0xff]
        %v262 = vld [vmem:[%s232 + $0x8] sm:$0xff]
        %v263 = vld [vmem:[%s1] sm:$0xf]
        %v264 = vld [vmem:[%s2] sm:$0xf]
        %266 = vset.pattern.permute.xlu0 0
        %267 = vperm.xlu0 %266, %v264
        %v268 = vpop.permute.xlu0 %267
        %vm270 = vcmask 64512
        %v272 = vsel %vm270, %v263, 0
        %274 = vmatprep.subr.mxu0 %v262
        %275 = vmatpush1.msra.mxu0 %v261
        %276 = vmatprep.subr.mxu0 0.0
        %277 = vmatpush1.msra.mxu0 0.0
        %278 = vmatprep.subr.mxu0 0.0
        %279 = vmatpush1.msra.mxu0 0.0
        %280 = vmatprep.subr.mxu0 0.0
        %281 = vmatpush1.msra.mxu0 0.0
        %282 = vmatprep.subr.mxu0 0.0
        %283 = vmatpush1.msra.mxu0 0.0
        %284 = vmatprep.subr.mxu0 0.0
        %285 = vmatpush1.msra.mxu0 0.0
        %286 = vmatprep.subr.mxu0 0.0
        %287 = vmatpush1.msra.mxu0 0.0
        %288 = vmatprep.subr.mxu0 0.0
        %289 = vmatpush1.msra.mxu0 0.0
        %290 = vmatprep.subr.mxu0 0.0
        %291 = vmatpush1.msra.mxu0 0.0
        %292 = vmatprep.subr.mxu0 0.0
        %293 = vmatpush1.msra.mxu0 0.0
        %294 = vmatprep.subr.mxu0 0.0
        %295 = vmatpush1.msra.mxu0 0.0
        %296 = vmatprep.subr.mxu0 0.0
        %297 = vmatpush1.msra.mxu0 0.0
        %298 = vmatprep.subr.mxu0 0.0
        %299 = vmatpush1.msra.mxu0 0.0
        %300 = vmatprep.subr.mxu0 0.0
        %301 = vmatpush1.msra.mxu0 0.0
        %302 = vmatprep.subr.mxu0 0.0
        %303 = vmatpush1.msra.mxu0 0.0
        %304 = vmatprep.subr.mxu0 0.0
        %305 = vmatpush1.msra.mxu0 0.0
        %306 = vmatprep.subr.mxu0 0.0
        %307 = vmatpush1.msra.mxu0 0.0
        %308 = vmatprep.subr.mxu0 0.0
        %309 = vmatpush1.msra.mxu0 0.0
        %310 = vmatprep.subr.mxu0 0.0
        %311 = vmatpush1.msra.mxu0 0.0
        %312 = vmatprep.subr.mxu0 0.0
        %313 = vmatpush1.msra.mxu0 0.0
        %314 = vmatprep.subr.mxu0 0.0
        %315 = vmatpush1.msra.mxu0 0.0
        %316 = vmatprep.subr.mxu0 0.0
        %317 = vmatpush1.msra.mxu0 0.0
        %318 = vmatprep.subr.mxu0 0.0
        %319 = vmatpush1.msra.mxu0 0.0
        %320 = vmatprep.subr.mxu0 0.0
        %321 = vmatpush1.msra.mxu0 0.0
        %322 = vmatprep.subr.mxu0 0.0
        %323 = vmatpush1.msra.mxu0 0.0
        %324 = vmatprep.subr.mxu0 0.0
        %325 = vmatpush1.msra.mxu0 0.0
        %326 = vmatprep.subr.mxu0 0.0
        %327 = vmatpush1.msra.mxu0 0.0
        %328 = vmatprep.subr.mxu0 0.0
        %329 = vmatpush1.msra.mxu0 0.0
        %330 = vmatprep.subr.mxu0 0.0
        %331 = vmatpush1.msra.mxu0 0.0
        %332 = vmatprep.subr.mxu0 0.0
        %333 = vmatpush1.msra.mxu0 0.0
        %334 = vmatprep.subr.mxu0 0.0
        %335 = vmatpush1.msra.mxu0 0.0
        %336 = vmatprep.subr.mxu0 0.0
        %337 = vmatpush1.msra.mxu0 0.0
        %338 = vmatprep.mubr.f32.mxu0 0.0
        %339 = vmatmul.mubr.f32.gmra.mrb[0].mxu0 %v272
        %v340 = vpop.f32.mrb[0].mxu0
        %v341 = vadd.f32 %v268, %v340
        %v342 = vpop.f32.mrb[0].mxu0
        %v343 = vadd.f32 %v268, %v342
        %344 = vdwg.mxu0
        %v345 = vmax.f32 %v341, 0.0
        %v346 = vmax.f32 %v343, 0.0
        %v347 = vld [vmem:[%s3] sm:$0xff]
        %v348 = vld [vmem:[%s4] sm:$0xff]
        %350 = vset.pattern.permute.xlu0 0
        %351 = vperm.xlu0 %350, %v348
        %v352 = vpop.permute.xlu0 %351
        %vm354 = vcmask 31744
        %v356 = vsel %vm354, %v347, 0
        %vm358 = vcmask 1043456
        %v360 = vsel %vm358, %v345, 0
        %v363 = vsel %vm358, %v346, 0
        %365 = vmatprep.subr.mxu0 %v363
        %366 = vmatpush1.msra.mxu0 %v360
        %367 = vmatprep.subr.mxu0 0.0
        %368 = vmatpush1.msra.mxu0 0.0
        %369 = vmatprep.subr.mxu0 0.0
        %370 = vmatpush1.msra.mxu0 0.0
        %371 = vmatprep.subr.mxu0 0.0
        %372 = vmatpush1.msra.mxu0 0.0
        %373 = vmatprep.subr.mxu0 0.0
        %374 = vmatpush1.msra.mxu0 0.0
        %375 = vmatprep.subr.mxu0 0.0
        %376 = vmatpush1.msra.mxu0 0.0
        %377 = vmatprep.subr.mxu0 0.0
        %378 = vmatpush1.msra.mxu0 0.0
        %379 = vmatprep.subr.mxu0 0.0
        %380 = vmatpush1.msra.mxu0 0.0
        %381 = vmatprep.subr.mxu0 0.0
        %382 = vmatpush1.msra.mxu0 0.0
        %383 = vmatprep.subr.mxu0 0.0
        %384 = vmatpush1.msra.mxu0 0.0
        %385 = vmatprep.subr.mxu0 0.0
        %386 = vmatpush1.msra.mxu0 0.0
        %387 = vmatprep.subr.mxu0 0.0
        %388 = vmatpush1.msra.mxu0 0.0
        %389 = vmatprep.subr.mxu0 0.0
        %390 = vmatpush1.msra.mxu0 0.0
        %391 = vmatprep.subr.mxu0 0.0
        %392 = vmatpush1.msra.mxu0 0.0
        %393 = vmatprep.subr.mxu0 0.0
        %394 = vmatpush1.msra.mxu0 0.0
        %395 = vmatprep.subr.mxu0 0.0
        %396 = vmatpush1.msra.mxu0 0.0
        %397 = vmatprep.subr.mxu0 0.0
        %398 = vmatpush1.msra.mxu0 0.0
        %399 = vmatprep.subr.mxu0 0.0
        %400 = vmatpush1.msra.mxu0 0.0
        %401 = vmatprep.subr.mxu0 0.0
        %402 = vmatpush1.msra.mxu0 0.0
        %403 = vmatprep.subr.mxu0 0.0
        %404 = vmatpush1.msra.mxu0 0.0
        %405 = vmatprep.subr.mxu0 0.0
        %406 = vmatpush1.msra.mxu0 0.0
        %407 = vmatprep.subr.mxu0 0.0
        %408 = vmatpush1.msra.mxu0 0.0
        %409 = vmatprep.subr.mxu0 0.0
        %410 = vmatpush1.msra.mxu0 0.0
        %411 = vmatprep.subr.mxu0 0.0
        %412 = vmatpush1.msra.mxu0 0.0
        %413 = vmatprep.subr.mxu0 0.0
        %414 = vmatpush1.msra.mxu0 0.0
        %415 = vmatprep.subr.mxu0 0.0
        %416 = vmatpush1.msra.mxu0 0.0
        %417 = vmatprep.subr.mxu0 0.0
        %418 = vmatpush1.msra.mxu0 0.0
        %419 = vmatprep.subr.mxu0 0.0
        %420 = vmatpush1.msra.mxu0 0.0
        %421 = vmatprep.subr.mxu0 0.0
        %422 = vmatpush1.msra.mxu0 0.0
        %423 = vmatprep.subr.mxu0 0.0
        %424 = vmatpush1.msra.mxu0 0.0
        %425 = vmatprep.subr.mxu0 0.0
        %426 = vmatpush1.msra.mxu0 0.0
        %427 = vmatprep.subr.mxu0 0.0
        %428 = vmatpush1.msra.mxu0 0.0
        %429 = vmatprep.mubr.f32.mxu0 0.0
        %430 = vmatmul.mubr.f32.gmra.mrb[0].mxu0 %v356
        %v431 = vpop.f32.mrb[0].mxu0
        %v432 = vadd.f32 %v352, %v431
        %v433 = vpop.f32.mrb[0].mxu0
        %v434 = vadd.f32 %v352, %v433
        %435 = vdwg.mxu0
        %436 = vst [vmem:[%s258] sm:$0xff] %v432
        %437 = vst [vmem:[%s258 + $0x8] sm:$0xff] %v434
        %s438 = sand.u32 %s156, 1
        %s439 = scalar_lea.sflag [#allocation4], %s438
        %s440 = sand.u32 %s156, 1
        %s441 = smul.addr %s440, 16
        %s442 = scalar_lea.vmem [#allocation5], %s441
        // Predicated region
        $region45: #{tpu_custom_call.1} parent=39 // pred_check
          %p443 = pneg %p166
        $region46: #{tpu_custom_call.1} parent=39 // pred_check_branch
          %445 = sbr.rel (%p443) target = $region48
        $region47: #{tpu_custom_call.1} parent=39 // pred_region
          %s446 = smul.u32 2, %s27
          %s448 = ssub.s32 256, 256
          %449 = vsyncadd %s439, %s448
          %s450 = smul.addr %s26, 2
          %s451 = sadd.s32 %s446, %s450
          %s452 = smul.addr %s451, 128
          %s453 = scalar_lea.hbm %s5, %s452
          %s455 = sshll.u32 %s442, 4
          %s456 = int_to_ptr.vmem [resolvable:$true] %s455
          %458 = dma.vmem_to_hbm [thread:$0]  %s456, 256, %s453, %s439
        $region48: #{tpu_custom_call.1} parent=39 // pred_fallthru
          _
      $region40: #{tpu_custom_call.1} parent=5 // pred_fallthru
        _
      %p459 = scmp.le.s32.totalorder 2, %s17
      // Predicated region
      $region49: #{tpu_custom_call.1} parent=5 // pred_check
        %p460 = pneg %p459
      $region50: #{tpu_custom_call.1} parent=5 // pred_check_branch
        %462 = sbr.rel (%p460) target = $region52
      $region51: #{tpu_custom_call.1} parent=5 // pred_region
        %s463 = ssub.s32 %s17, 2
        // Predicated region
        $region53: #{tpu_custom_call.1} parent=51 // pred_check
          %p464 = pneg %p172
        $region54: #{tpu_custom_call.1} parent=51 // pred_check_branch
          %466 = sbr.rel (%p464) target = $region56
        $region55: #{tpu_custom_call.1} parent=51 // pred_region
          %s467 = sand.u32 %s157, 1
          %s468 = scalar_lea.sflag [#allocation4], %s467
          %s469 = sand.u32 %s157, 1
          %s470 = smul.addr %s469, 16
          %s471 = scalar_lea.vmem [#allocation5], %s470
          %472 = dma.done %s468, 256
        $region56: #{tpu_custom_call.1} parent=51 // pred_fallthru
          _
      $region52: #{tpu_custom_call.1} parent=5 // pred_fallthru
        _
    $region6: #{tpu_custom_call.1} parent=1 // loop_footer
      %s21 = sadd.s32 1, %s17
    $region7: #{tpu_custom_call.1} parent=1 // loop_footer_branch
      %16 = sbr.rel target = $region3
    $region8: #{tpu_custom_call.1} parent=1 // loop_exit
      _
    %473 = vsyncpa [#allocation3], 1
    %s474 = scalar_lea.sflag [#allocation3], 1
    %475 = vsyncpa %s474, 1
    %476 = vsyncpa [#allocation4], 1
    %s477 = scalar_lea.sflag [#allocation4], 1
    %478 = vsyncpa %s477, 1

</llo_original>
